<compile_context>
chip_gen: v5e
topology: v5e:2x2
jax: 0.10.0
libtpu: 0.0.40
codegen_flags: <defaults>
</compile_context>

<pallas_src>
import jax
import jax.numpy as jnp
from jax.experimental import pallas as pl
from jax.experimental.pallas import tpu as pltpu


def _round_up(x, m):
    return ((x + m - 1) // m) * m


def _lwn_kernel(x_ref, w_ref, scale_ref, bias_ref, o_ref, acc_ref):
    """One (TM, TN) output tile; K reduction over grid axis 2."""
    k = pl.program_id(2)

    @pl.when(k == 0)
    def _():
        acc_ref[...] = jnp.zeros_like(acc_ref)

    # Raw (un-normalized) matmul; MXU with f32 accumulation.
    acc_ref[...] += jnp.dot(x_ref[...], w_ref[...],
                            preferred_element_type=jnp.float32)

    @pl.when(k == pl.num_programs(2) - 1)
    def _():
        # Epilogue: fold weight normalization in as a per-output-column scale.
        y = acc_ref[...] * scale_ref[...] + bias_ref[...]
        o_ref[...] = y.astype(o_ref.dtype)


def linear_weight_norm(x, weight, bias=None, weight_scale=1.0,
                       *, tm=256, tn=256, tk=512):
    """Pallas implementation of LinearWeightNorm.forward.

    x:            (batch, in_features)
    weight:       (out_features, in_features)
    bias:         (out_features,) or None
    weight_scale: scalar or (out_features, 1) array (PyTorch semantics)
    """
    batch, in_features = x.shape
    out_features, in_features_w = weight.shape
    assert in_features == in_features_w

    # ---- one-time prep (tiny XLA ops, not repeated per grid step) ----------
    w32 = weight.astype(jnp.float32)
    inv_norm = 1.0 / jnp.sqrt(jnp.sum(w32 * w32, axis=1))        # (out,)
    ws = jnp.asarray(weight_scale, jnp.float32).reshape(-1)      # (1,) or (out,)
    col_scale = (ws * inv_norm).reshape(1, out_features)         # (1, out)
    if bias is None:
        bias = jnp.zeros((out_features,), jnp.float32)
    bias2d = bias.astype(jnp.float32).reshape(1, out_features)

    # Pre-transpose so out_features is the lane axis of both W and the output.
    w_t = weight.T                                               # (in, out)

    # ---- tiling ------------------------------------------------------------
    # M (batch): multiple of 8 sublanes, up to `tm`.
    tm_eff = min(_round_up(tm, 8), _round_up(batch, 8))
    # N (out): pad to a lane-dense multiple of 128, tile with tn_eff | n_pad.
    n_pad = _round_up(out_features, 128)
    tn_eff = min(_round_up(tn, 128), n_pad)
    if n_pad % tn_eff != 0:
        tn_eff = 128
    # K (in): keep whole if small, else tile in multiples of 128 and zero-pad.
    if in_features <= tk:
        tk_eff = in_features
    else:
        tk_eff = _round_up(tk, 128)
    k_pad = _round_up(in_features, tk_eff)

    # ---- zero-pad operands (padding contributes exactly 0 to the matmul) ---
    x_p = x
    w_t_p = w_t
    if k_pad != in_features:
        x_p = jnp.pad(x_p, ((0, 0), (0, k_pad - in_features)))
        w_t_p = jnp.pad(w_t_p, ((0, k_pad - in_features), (0, 0)))
    col_scale_p = col_scale
    bias_p = bias2d
    if n_pad != out_features:
        w_t_p = jnp.pad(w_t_p, ((0, 0), (0, n_pad - out_features)))
        col_scale_p = jnp.pad(col_scale_p, ((0, 0), (0, n_pad - out_features)))
        bias_p = jnp.pad(bias_p, ((0, 0), (0, n_pad - out_features)))

    grid = (pl.cdiv(batch, tm_eff), n_pad // tn_eff, k_pad // tk_eff)

    out_padded = pl.pallas_call(
        _lwn_kernel,
        out_shape=jax.ShapeDtypeStruct((batch, n_pad), x.dtype),
        grid_spec=pltpu.PrefetchScalarGridSpec(
            num_scalar_prefetch=0,
            grid=grid,
            in_specs=[
                pl.BlockSpec((tm_eff, tk_eff), lambda i, j, k: (i, k)),  # x tile
                pl.BlockSpec((tk_eff, tn_eff), lambda i, j, k: (k, j)),  # W^T tile
                pl.BlockSpec((1, tn_eff), lambda i, j, k: (0, j)),       # col scale
                pl.BlockSpec((1, tn_eff), lambda i, j, k: (0, j)),       # bias
            ],
            out_specs=pl.BlockSpec((tm_eff, tn_eff), lambda i, j, k: (i, j)),
            scratch_shapes=[pltpu.VMEM((tm_eff, tn_eff), jnp.float32)],
        ),
        compiler_params=pltpu.CompilerParams(
            # batch & out axes parallel (megacore sharding on v7x);
            # K reduction axis last and arbitrary.
            dimension_semantics=("parallel", "parallel", "arbitrary"),
        ),
    )(x_p, w_t_p, col_scale_p, bias_p)

    if n_pad != out_features:
        out_padded = out_padded[:, :out_features]
    return out_padded


def linear_weight_norm_ref(x, weight, bias, weight_scale=1.0):
    ws = jnp.asarray(weight_scale, jnp.float32)
    w = weight * ws / jnp.sqrt(jnp.sum(weight ** 2, axis=1, keepdims=True))
    return x @ w.T + bias[None, :]


if __name__ == "__main__":
    key = jax.random.PRNGKey(0)
    k_x, k_w = jax.random.split(key)

    batch, in_features, out_features = 8, 32, 64

    # Mirror the PyTorch __init__: weight = randn(out, in) * 0.1 ; bias = zeros.
    weight = jax.random.normal(k_w, (out_features, in_features), jnp.float32) * 0.1
    bias = jnp.zeros((out_features,), jnp.float32)
    x = jax.random.normal(k_x, (batch, in_features), jnp.float32)

    # Default module config (weight_scale = 1, scalar).
    y = jax.block_until_ready(linear_weight_norm(x, weight, bias))
    y_ref = linear_weight_norm_ref(x, weight, bias)
    assert y.shape == (batch, out_features)
    assert jnp.allclose(y, y_ref, atol=1e-4, rtol=1e-4), "mismatch vs reference"

    # weight_scale given as an (out, 1) parameter (PyTorch weight_scale=2 path).
    wscale = jnp.full((out_features, 1), 2.0, jnp.float32)
    y2 = jax.block_until_ready(linear_weight_norm(x, weight, bias, wscale))
    y2_ref = linear_weight_norm_ref(x, weight, bias, wscale)
    assert jnp.allclose(y2, y2_ref, atol=1e-4, rtol=1e-4), "mismatch (weight_scale)"

    print("KERNEL_OK")
</pallas_src>

<mosaic_0001>
module attributes {stable_mosaic.version = 11 : i64} {
  func.func @_lwn_kernel(%arg0: i32, %arg1: i32, %arg2: i32, %arg3: memref<8x32xf32, #tpu.memory_space<vmem>>, %arg4: memref<32x128xf32, #tpu.memory_space<vmem>>, %arg5: memref<1x128xf32, #tpu.memory_space<vmem>>, %arg6: memref<1x128xf32, #tpu.memory_space<vmem>>, %arg7: memref<8x128xf32, #tpu.memory_space<vmem>>, %arg8: memref<8x128xf32, #tpu.memory_space<vmem>>) attributes {dimension_semantics = [#tpu.dimension_semantics<parallel>, #tpu.dimension_semantics<parallel>, #tpu.dimension_semantics<arbitrary>], iteration_bounds = array<i64: 1, 1, 1>, scalar_prefetch = 0 : i64, scratch_operands = 1 : i64, tpu.core_type = #tpu.core_type<tc>, window_params = [{transform_indices = @transform_0, window_bounds = array<i64: 8, 32>}, {transform_indices = @transform_1, window_bounds = array<i64: 32, 128>}, {transform_indices = @transform_2, window_bounds = array<i64: 1, 128>}, {transform_indices = @transform_3, window_bounds = array<i64: 1, 128>}, {transform_indices = @transform_4, window_bounds = array<i64: 8, 128>}]} {
    %c0_i32 = arith.constant 0 : i32
    %0 = arith.cmpi eq, %arg2, %c0_i32 : i32
    %1 = arith.extui %0 : i1 to i32
    %c0_i32_0 = arith.constant 0 : i32
    %2 = arith.cmpi ne, %1, %c0_i32_0 : i32
    scf.if %2 {
      %cst_10 = arith.constant 0.000000e+00 : f32
      %12 = vector.broadcast %cst_10 : f32 to vector<8x128xf32>
      %c0_11 = arith.constant 0 : index
      %c0_12 = arith.constant 0 : index
      %13 = vector.load %arg8[%c0_11, %c0_12] : memref<8x128xf32, #tpu.memory_space<vmem>>, vector<8x128xf32>
      tpu.vector_store %arg8[%c0_11, %c0_12], %12 {strides = array<i32>} : memref<8x128xf32, #tpu.memory_space<vmem>>, vector<8x128xf32>,
    } else {
    }
    %c0 = arith.constant 0 : index
    %c0_1 = arith.constant 0 : index
    %3 = vector.load %arg8[%c0, %c0_1] : memref<8x128xf32, #tpu.memory_space<vmem>>, vector<8x128xf32>
    %c0_2 = arith.constant 0 : index
    %c0_3 = arith.constant 0 : index
    %4 = vector.load %arg3[%c0_2, %c0_3] : memref<8x32xf32, #tpu.memory_space<vmem>>, vector<8x32xf32>
    %c0_4 = arith.constant 0 : index
    %c0_5 = arith.constant 0 : index
    %5 = vector.load %arg4[%c0_4, %c0_5] : memref<32x128xf32, #tpu.memory_space<vmem>>, vector<32x128xf32>
    %cst = arith.constant dense<0.000000e+00> : vector<8x128xf32>
    %6 = tpu.matmul %4, %5, %cst {dimension_numbers = #tpu.dot_dimension_numbers<[1], [0], [0], [1], [0, 0, 1, 1], [], []>} : vector<8x32xf32>, vector<32x128xf32>, vector<8x128xf32> -> vector<8x128xf32>
    %7 = arith.addf %3, %6 : vector<8x128xf32>
    %c0_6 = arith.constant 0 : index
    %c0_7 = arith.constant 0 : index
    %8 = vector.load %arg8[%c0_6, %c0_7] : memref<8x128xf32, #tpu.memory_space<vmem>>, vector<8x128xf32>
    tpu.vector_store %arg8[%c0_6, %c0_7], %7 {strides = array<i32>} : memref<8x128xf32, #tpu.memory_space<vmem>>, vector<8x128xf32>,
    %c0_i32_8 = arith.constant 0 : i32
    %9 = arith.cmpi eq, %arg2, %c0_i32_8 : i32
    %10 = arith.extui %9 : i1 to i32
    %c0_i32_9 = arith.constant 0 : i32
    %11 = arith.cmpi ne, %10, %c0_i32_9 : i32
    scf.if %11 {
      %c0_10 = arith.constant 0 : index
      %c0_11 = arith.constant 0 : index
      %12 = vector.load %arg8[%c0_10, %c0_11] : memref<8x128xf32, #tpu.memory_space<vmem>>, vector<8x128xf32>
      %c0_12 = arith.constant 0 : index
      %c0_13 = arith.constant 0 : index
      %13 = vector.load %arg5[%c0_12, %c0_13] : memref<1x128xf32, #tpu.memory_space<vmem>>, vector<1x128xf32>
      %14 = vector.broadcast %13 : vector<1x128xf32> to vector<8x128xf32>
      %15 = arith.mulf %12, %14 : vector<8x128xf32>
      %c0_14 = arith.constant 0 : index
      %c0_15 = arith.constant 0 : index
      %16 = vector.load %arg6[%c0_14, %c0_15] : memref<1x128xf32, #tpu.memory_space<vmem>>, vector<1x128xf32>
      %17 = vector.broadcast %16 : vector<1x128xf32> to vector<8x128xf32>
      %18 = arith.addf %15, %17 : vector<8x128xf32>
      %c0_16 = arith.constant 0 : index
      %c0_17 = arith.constant 0 : index
      %19 = vector.load %arg7[%c0_16, %c0_17] : memref<8x128xf32, #tpu.memory_space<vmem>>, vector<8x128xf32>
      tpu.vector_store %arg7[%c0_16, %c0_17], %18 {strides = array<i32>} : memref<8x128xf32, #tpu.memory_space<vmem>>, vector<8x128xf32>,
    } else {
    }
    return
  }
  func.func @transform_0(%arg0: i32, %arg1: i32, %arg2: i32) -> (i32, i32) {
    %c0_i32 = arith.constant 0 : i32
    return %arg0, %arg2 : i32, i32
  }
  func.func @transform_1(%arg0: i32, %arg1: i32, %arg2: i32) -> (i32, i32) {
    %c0_i32 = arith.constant 0 : i32
    return %arg2, %arg1 : i32, i32
  }
  func.func @transform_2(%arg0: i32, %arg1: i32, %arg2: i32) -> (i32, i32) {
    %c0_i32 = arith.constant 0 : i32
    %c0_i32_0 = arith.constant 0 : i32
    return %c0_i32, %arg1 : i32, i32
  }
  func.func @transform_3(%arg0: i32, %arg1: i32, %arg2: i32) -> (i32, i32) {
    %c0_i32 = arith.constant 0 : i32
    %c0_i32_0 = arith.constant 0 : i32
    return %c0_i32, %arg1 : i32, i32
  }
  func.func @transform_4(%arg0: i32, %arg1: i32, %arg2: i32) -> (i32, i32) {
    %c0_i32 = arith.constant 0 : i32
    return %arg0, %arg1 : i32, i32
  }
}

</mosaic_0001>

<llo_original>
// kernel: tpu_custom_call.1
$region0: #{tpu_custom_call.1}
  #allocation0 [shape = 'u32[]', space=smem, size = 0x4, offset = 0x4, fixed_abs, tag = 'smem constant byte address 0x4 - core index']
  #allocation1 [shape = 'u32[72,128]{1,0:T(1,128)}', space=vmem, size = 0x9000, scoped, tag = 'internal scratch']
  #allocation2 [shape = 'f32[8,128]{1,0:T(8,128)}', space=vmem, size = 0x1000, scoped, tag = 'scratch operand']
  %s0 = inlined_call_operand.hbm [shape: f32[8,32], index: 0, kind: input, shape index: {}]
  %s1 = inlined_call_operand.hbm [shape: f32[32,128], index: 1, kind: input, shape index: {}]
  %s2 = inlined_call_operand.vmem [shape: f32[1,128], index: 2, kind: input, shape index: {}]
  %s3 = inlined_call_operand.vmem [shape: f32[1,128], index: 3, kind: input, shape index: {}]
  %s4 = inlined_call_operand.hbm [shape: f32[8,128], index: 4, kind: output, shape index: {}]
  %s5 = sld [smem:[#allocation0]]
  $region42: #{tpu_custom_call.1} parent=0
    _
  %s7 = ssub.s32 1, %s5
  %s8 = scalar_select 0, %s7, %s5
  $region1: #{tpu_custom_call.1} parent=0
    #allocation3 [shape = 'u8[4096]{0}', space=vmem, size = 0x1000, scoped, tag = 'input window, operand 0, single buffered']
    #allocation4 [shape = 's32[1]{0}', space=sflag, size = 0x4, scoped, tag = 'scoped memory for tpu_custom_call.1']
    #allocation5 [shape = 's32[1]{0}', space=sflag, size = 0x4, scoped, tag = 'scoped memory for tpu_custom_call.1']
    #allocation6 [shape = 'u8[16384]{0}', space=vmem, size = 0x4000, scoped, tag = 'input window, operand 1, single buffered']
    #allocation7 [shape = 's32[1]{0}', space=sflag, size = 0x4, scoped, tag = 'scoped memory for tpu_custom_call.1']
    #allocation8 [shape = 'u8[4096]{0}', space=vmem, size = 0x1000, scoped, tag = 'output window, operand 0, single buffered']
    %9 = vsyncpa [#allocation4], 0
    %10 = vsyncpa [#allocation7], 0
    %11 = vsyncpa [#allocation5], 0
    // Predicated region
    $region2: #{tpu_custom_call.1} parent=1 // pred_check
      _
    $region3: #{tpu_custom_call.1} parent=1 // pred_check_branch
      %13 = sbr.rel (0) target = $region5
    $region4: #{tpu_custom_call.1} parent=1 // pred_region
      %15 = vsyncadd [#allocation4], 0
      %s17 = sshll.u32 %s0, 4
      %s18 = int_to_ptr.hbm [resolvable:$true] %s17
      %s19 = sshll.u32 [#allocation3], 4
      %s20 = int_to_ptr.vmem [resolvable:$true] %s19
      %22 = dma.hbm_to_vmem [thread:$0]  %s18, 128, %s20, [#allocation4]
    $region5: #{tpu_custom_call.1} parent=1 // pred_fallthru
      _
    // Predicated region
    $region6: #{tpu_custom_call.1} parent=1 // pred_check
      _
    $region7: #{tpu_custom_call.1} parent=1 // pred_check_branch
      %24 = sbr.rel (0) target = $region9
    $region8: #{tpu_custom_call.1} parent=1 // pred_region
      %26 = vsyncadd [#allocation7], 0
      %s27 = sshll.u32 %s1, 4
      %s28 = int_to_ptr.hbm [resolvable:$true] %s27
      %s29 = sshll.u32 [#allocation6], 4
      %s30 = int_to_ptr.vmem [resolvable:$true] %s29
      %35 = dma.hbm_to_vmem [thread:$0]  %s28, 512, %s30, [#allocation7], 128, 128, 8
    $region9: #{tpu_custom_call.1} parent=1 // pred_fallthru
      _
    // Predicated region
    $region10: #{tpu_custom_call.1} parent=1 // pred_check
      _
    $region11: #{tpu_custom_call.1} parent=1 // pred_check_branch
      %37 = sbr.rel (0) target = $region13
    $region12: #{tpu_custom_call.1} parent=1 // pred_region
      _
    $region13: #{tpu_custom_call.1} parent=1 // pred_fallthru
      _
    // Predicated region
    $region14: #{tpu_custom_call.1} parent=1 // pred_check
      _
    $region15: #{tpu_custom_call.1} parent=1 // pred_check_branch
      %39 = sbr.rel (0) target = $region17
    $region16: #{tpu_custom_call.1} parent=1 // pred_region
      _
    $region17: #{tpu_custom_call.1} parent=1 // pred_fallthru
      _
    // Predicated region
    $region18: #{tpu_custom_call.1} parent=1 // pred_check
      _
    $region19: #{tpu_custom_call.1} parent=1 // pred_check_branch
      %41 = sbr.rel (0) target = $region21
    $region20: #{tpu_custom_call.1} parent=1 // pred_region
      %43 = dma.done [#allocation4], 128
    $region21: #{tpu_custom_call.1} parent=1 // pred_fallthru
      _
    // Predicated region
    $region22: #{tpu_custom_call.1} parent=1 // pred_check
      _
    $region23: #{tpu_custom_call.1} parent=1 // pred_check_branch
      %45 = sbr.rel (0) target = $region25
    $region24: #{tpu_custom_call.1} parent=1 // pred_region
      %47 = dma.done [#allocation7], 512
    $region25: #{tpu_custom_call.1} parent=1 // pred_fallthru
      _
    %p48 = scmp.eq.s32.totalorder 0, 0
    // Predicated region
    $region26: #{tpu_custom_call.1} parent=1 // pred_check
      %p49 = pneg %p48
    $region27: #{tpu_custom_call.1} parent=1 // pred_check_branch
      %51 = sbr.rel (%p49) target = $region29
    $region28: #{tpu_custom_call.1} parent=1 // pred_region
      %52 = vst [vmem:[#allocation2] sm:$0xff] 0.0
    $region29: #{tpu_custom_call.1} parent=1 // pred_fallthru
      _
    %v53 = vld [vmem:[#allocation2] sm:$0xff]
    %v54 = vld [vmem:[#allocation3] sm:$0xff]
    %v55 = vld [vmem:[#allocation6] sm:$0xff]
    %v56 = vld [vmem:[#allocation6 + $0x8] sm:$0xff]
    %v57 = vld [vmem:[#allocation6 + $0x10] sm:$0xff]
    %v58 = vld [vmem:[#allocation6 + $0x18] sm:$0xff]
    %vm59 = vcmask 261120
    %v61 = vsel %vm59, %v54, 0
    %63 = vmatpush.msra.mxu0 0.0
    %64 = vmatpush.msra.mxu0 0.0
    %65 = vmatpush.msra.mxu0 0.0
    %66 = vmatpush.msra.mxu0 0.0
    %67 = vmatpush.msra.mxu0 0.0
    %68 = vmatpush.msra.mxu0 0.0
    %69 = vmatpush.msra.mxu0 0.0
    %70 = vmatpush.msra.mxu0 0.0
    %71 = vmatpush.msra.mxu0 0.0
    %72 = vmatpush.msra.mxu0 0.0
    %73 = vmatpush.msra.mxu0 0.0
    %74 = vmatpush.msra.mxu0 0.0
    %75 = vmatpush.msra.mxu0 %v58
    %76 = vmatpush.msra.mxu0 %v57
    %77 = vmatpush.msra.mxu0 %v56
    %78 = vmatpush.msra.mxu0 %v55
    %79 = vmatmul.f32.gmra.mxu0 %v61
    %v80 = vpop.f32.mrf.mxu0
    %v81 = vadd.f32 0.0, %v80
    %82 = vdwg.mxu0
    %v83 = vadd.f32 %v53, %v81
    %84 = vst [vmem:[#allocation2] sm:$0xff] %v83
    // Predicated region
    $region30: #{tpu_custom_call.1} parent=1 // pred_check
      %p85 = pneg %p48
    $region31: #{tpu_custom_call.1} parent=1 // pred_check_branch
      %87 = sbr.rel (%p85) target = $region33
    $region32: #{tpu_custom_call.1} parent=1 // pred_region
      %v88 = vld [vmem:[#allocation2] sm:$0xff]
      %v89 = vld [vmem:[%s2] sm:$0x1]
      %v91 = vperm.slane %v89, 0
      %v93 = vmul.f32 %v88, %v91
      %v94 = vld [vmem:[%s3] sm:$0x1]
      %v96 = vperm.slane %v94, 0
      %v98 = vadd.f32 %v93, %v96
      %99 = vst [vmem:[#allocation8] sm:$0xff] %v98
    $region33: #{tpu_custom_call.1} parent=1 // pred_fallthru
      _
    // Predicated region
    $region34: #{tpu_custom_call.1} parent=1 // pred_check
      _
    $region35: #{tpu_custom_call.1} parent=1 // pred_check_branch
      %101 = sbr.rel (0) target = $region37
    $region36: #{tpu_custom_call.1} parent=1 // pred_region
      %103 = vsyncadd [#allocation5], 0
      %s105 = sshll.u32 [#allocation8], 4
      %s106 = int_to_ptr.vmem [resolvable:$true] %s105
      %s107 = sshll.u32 %s4, 4
      %s108 = int_to_ptr.hbm [resolvable:$true] %s107
      %110 = dma.vmem_to_hbm [thread:$0]  %s106, 128, %s108, [#allocation5]
    $region37: #{tpu_custom_call.1} parent=1 // pred_fallthru
      _
    // Predicated region
    $region38: #{tpu_custom_call.1} parent=1 // pred_check
      _
    $region39: #{tpu_custom_call.1} parent=1 // pred_check_branch
      %112 = sbr.rel (0) target = $region41
    $region40: #{tpu_custom_call.1} parent=1 // pred_region
      %114 = dma.done [#allocation5], 128
    $region41: #{tpu_custom_call.1} parent=1 // pred_fallthru
      _
    %115 = vsyncpa [#allocation4], 1
    %116 = vsyncpa [#allocation7], 1
    %117 = vsyncpa [#allocation5], 1

</llo_original>
